<compile_context>
chip_gen: v7x
topology: tpu7x:2x2x1
jax: 0.10.0
libtpu: 0.0.40
codegen_flags: <defaults>
</compile_context>

<pallas_src>
import itertools
import numpy as np
import jax
import jax.numpy as jnp
from jax.experimental import pallas as pl
from jax.experimental.pallas import tpu as pltpu

LEAKY_SLOPE = 0.01   # torch.nn.LeakyReLU default
OUT_LANES = 128      # lane-dense packed logits: [row(2) | col(2) | cell(2) | 0-pad]


def _leaky(x):
    # maximum(x, a*x) == LeakyReLU(x) for 0 < a < 1; cheaper than compare+select
    return jnp.maximum(x, LEAKY_SLOPE * x)


# -----------------------------------------------------------------------------
# Kernel A: node path.
#   h    = ReLU( box_feat @ W_be + b_be )               (box_emb, done as VPU FMAs)
#   f    = h @ W_fl + b_fl                               (fusion_linear)
#   proj = f @ [W1_row[:g]|W1_col[:g]|W1_cell[:g] | W1_row[g:]|W1_col[g:]|W1_cell[g:]]
# proj is emitted bf16 [n_pad, 768]; columns 0:384 are the "i-half" projection,
# 384:768 the "j-half" (concat(f[i],f[j]) @ W1 == proj_a[i] + proj_b[j]).
# -----------------------------------------------------------------------------
def node_proj_kernel(box_ref, wbe_ref, bbe_ref, wfl_ref, bfl_ref, w1_ref, proj_ref):
    box = box_ref[...]                                   # [tile_n, 4] f32
    wbe = wbe_ref[...]                                   # [4, 128]    f32
    # box_emb: K=4 -> 128 as 4 broadcast multiply-adds on the VPU (a K=4 matmul
    # would occupy 4/128 of an MXU pass for a full-latency round trip).
    h = (box[:, 0:1] * wbe[0:1, :]
         + box[:, 1:2] * wbe[1:2, :]
         + box[:, 2:3] * wbe[2:3, :]
         + box[:, 3:4] * wbe[3:4, :]
         + bbe_ref[...])
    h = jnp.maximum(h, 0.0)                              # ReLU
    f = jnp.dot(h.astype(jnp.bfloat16), wfl_ref[...],
                preferred_element_type=jnp.float32) + bfl_ref[...]      # fusion_linear
    proj_ref[...] = jnp.dot(f.astype(jnp.bfloat16), w1_ref[...],
                            preferred_element_type=jnp.float32).astype(proj_ref.dtype)


def _node_tiles(n):
    n = max(n, 1)
    if n <= 256:
        n_pad = ((n + 15) // 16) * 16        # multiple of 16: bf16 packs 2 rows/sublane
        return n_pad, n_pad
    tile = 256                               # row-tiled + 'parallel' once N grows
    return pl.cdiv(n, tile) * tile, tile


def node_projection(box_feat, wbe, bbe, wfl, bfl, w1_ab):
    n = box_feat.shape[0]
    n_pad, tile_n = _node_tiles(n)
    box_p = jnp.pad(box_feat.astype(jnp.float32), ((0, n_pad - n), (0, 0)))
    h6 = w1_ab.shape[1]                      # 6 * gcn_out_feat
    proj = pl.pallas_call(
        node_proj_kernel,
        out_shape=jax.ShapeDtypeStruct((n_pad, h6), jnp.bfloat16),
        grid_spec=pltpu.PrefetchScalarGridSpec(
            num_scalar_prefetch=0,
            grid=(n_pad // tile_n,),
            in_specs=[
                pl.BlockSpec((tile_n, box_p.shape[1]), lambda i: (i, 0)),
                pl.BlockSpec(wbe.shape, lambda i: (0, 0)),
                pl.BlockSpec((1, bbe.shape[0]), lambda i: (0, 0)),
                pl.BlockSpec(wfl.shape, lambda i: (0, 0)),
                pl.BlockSpec((1, bfl.shape[0]), lambda i: (0, 0)),
                pl.BlockSpec(w1_ab.shape, lambda i: (0, 0)),
            ],
            out_specs=pl.BlockSpec((tile_n, h6), lambda i: (i, 0)),
        ),
        compiler_params=pltpu.CompilerParams(dimension_semantics=("parallel",)),
    )(box_p, wbe, bbe.reshape(1, -1), wfl.astype(jnp.bfloat16),
      bfl.reshape(1, -1), w1_ab)
    # padded rows (index >= n) are never referenced by the pair indices
    return proj


# -----------------------------------------------------------------------------
# Kernel B: fused pair head (row + col + cell in one launch).
#   input  = proj_a[i] + proj_b[j]   (pre-summed in the wrapper, bf16 [tile, 384])
#   h = LeakyReLU( input + b1_all )                      # linear_{row,col,cell}
#   s = LeakyReLU( h @ W2_blockdiag + b2_all )           # [tile, 128] lane-dense, bf16
# Columns 0:2 / 2:4 / 4:6 of s are the row / col / cell logits.
# -----------------------------------------------------------------------------
def fused_pair_head_kernel(ps_ref, b1_ref, w2_ref, b2_ref, out_ref):
    h = _leaky(ps_ref[...].astype(jnp.float32) + b1_ref[...])   # f32 elementwise (v5e safe)
    s = jnp.dot(h.astype(jnp.bfloat16), w2_ref[...],
                preferred_element_type=jnp.float32) + b2_ref[...]
    out_ref[...] = _leaky(s).astype(out_ref.dtype)              # bf16 lane-dense store


def _choose_pair_tile(p):
    # Large tiles amortize ~0.35us/step overhead; aim for >=8 grid steps when P
    # allows so v7x's two TensorCores each get >=4 pipelined steps.  tile=2048
    # double-buffered working set is ~4.5 MB (well under 16 MiB v5e scoped VMEM).
    t = pl.next_power_of_2(pl.cdiv(max(p, 1), 8))
    return int(min(2048, max(128, t)))


def fused_pair_head(pair_sum, b1_all, w2_all, b2_all, *, tile):
    p_pad, hidden = pair_sum.shape                 # hidden = 3 * gcn_out_feat
    out_w = w2_all.shape[1]                        # 128 (lane-dense)
    grid = (p_pad // tile,)
    flops = 2 * p_pad * hidden * out_w + 6 * p_pad * hidden
    bytes_accessed = (p_pad * hidden * 2           # pre-summed input (bf16)
                      + p_pad * out_w * 2          # output (bf16)
                      + hidden * out_w * 2         # W2 (bf16)
                      + (hidden + out_w) * 4)      # biases
    return pl.pallas_call(
        fused_pair_head_kernel,
        out_shape=jax.ShapeDtypeStruct((p_pad, out_w), jnp.bfloat16),
        grid_spec=pltpu.PrefetchScalarGridSpec(
            num_scalar_prefetch=0,
            grid=grid,
            in_specs=[
                pl.BlockSpec((tile, hidden), lambda i: (i, 0)),
                pl.BlockSpec((1, hidden), lambda i: (0, 0)),
                pl.BlockSpec((hidden, out_w), lambda i: (0, 0)),
                pl.BlockSpec((1, out_w), lambda i: (0, 0)),
            ],
            out_specs=pl.BlockSpec((tile, out_w), lambda i: (i, 0)),
        ),
        compiler_params=pltpu.CompilerParams(dimension_semantics=("parallel",)),
        cost_estimate=pl.CostEstimate(flops=int(flops), transcendentals=0,
                                      bytes_accessed=int(bytes_accessed)),
    )(pair_sum, b1_all, w2_all, b2_all)


# -----------------------------------------------------------------------------
# Pure-JAX / numpy glue reproducing GraphBase.get_box_feat and
# GraphTableNet.get_sampling (targets=None branch).
# -----------------------------------------------------------------------------
def get_box_feat(cell_boxes, height, width):
    boxes = jnp.concatenate(cell_boxes, axis=0)                 # [N, 4] (x1,y1,x2,y2)
    box_w = boxes[:, 2] - boxes[:, 0]
    box_h = boxes[:, 3] - boxes[:, 1]
    ctr_x = (boxes[:, 2] + boxes[:, 0]) / 2
    ctr_y = (boxes[:, 3] + boxes[:, 1]) / 2
    return jnp.stack(
        (ctr_x / width, ctr_y / height, box_w / width, box_h / height), axis=1
    )


def get_sampling(cell_boxes):
    # Host-side, like the reference (itertools). Perf note: forces host work /
    # per-shape retrace if jitted; kept for semantic parity.
    pairs = []
    start = 0
    for cb in cell_boxes:
        n = cb.shape[0]
        pairs.extend(itertools.combinations(range(start, start + n), r=2))
        start += n
    pairs = np.array(pairs, dtype=np.int32)
    empty_t = np.array([], dtype=np.int32)
    return empty_t, pairs, empty_t, pairs, empty_t, pairs


# -----------------------------------------------------------------------------
# Parameters (deterministic, kaiming-style fan_out init as in _init_params)
# -----------------------------------------------------------------------------
def init_params(key, box_emb_feat=128, gcn_out_feat=128):
    def lin(k, fan_in, fan_out):
        std = np.sqrt(2.0 / fan_out)
        w = jax.random.normal(k, (fan_in, fan_out), jnp.float32) * std
        b = jnp.zeros((fan_out,), jnp.float32)
        return w, b

    ks = jax.random.split(key, 8)
    p = {}
    p["box_emb"] = lin(ks[0], 4, box_emb_feat)
    p["fusion_linear"] = lin(ks[1], box_emb_feat, gcn_out_feat)      # emb_feat = box_emb_feat
    p["linear_row"] = lin(ks[2], gcn_out_feat * 2, gcn_out_feat)
    p["pair_row_pred"] = lin(ks[3], gcn_out_feat, 2)
    p["linear_col"] = lin(ks[4], gcn_out_feat * 2, gcn_out_feat)
    p["pair_col_pred"] = lin(ks[5], gcn_out_feat, 2)
    p["linear_cell"] = lin(ks[6], gcn_out_feat * 2, gcn_out_feat)
    p["cls_cell"] = lin(ks[7], gcn_out_feat, 2)
    return p


def _fuse_head_params(params):
    """Pack the three pair heads into fused weight slabs (done once, tiny)."""
    gcn = params["linear_row"][0].shape[1]
    # first layer: split each W1 into the half hitting feat[i] and feat[j]
    w1_a = jnp.concatenate([params["linear_row"][0][:gcn],
                            params["linear_col"][0][:gcn],
                            params["linear_cell"][0][:gcn]], axis=1)        # [gcn, 3g]
    w1_b = jnp.concatenate([params["linear_row"][0][gcn:],
                            params["linear_col"][0][gcn:],
                            params["linear_cell"][0][gcn:]], axis=1)        # [gcn, 3g]
    w1_ab = jnp.concatenate([w1_a, w1_b], axis=1).astype(jnp.bfloat16)      # [gcn, 6g]
    b1_all = jnp.concatenate([params["linear_row"][1],
                              params["linear_col"][1],
                              params["linear_cell"][1]]).reshape(1, -1)     # [1, 3g] f32
    # second layer: block-diagonal, zero-padded to 128 lanes (lane-dense store)
    w2_all = jnp.zeros((3 * gcn, OUT_LANES), jnp.float32)
    w2_all = w2_all.at[0 * gcn:1 * gcn, 0:2].set(params["pair_row_pred"][0])
    w2_all = w2_all.at[1 * gcn:2 * gcn, 2:4].set(params["pair_col_pred"][0])
    w2_all = w2_all.at[2 * gcn:3 * gcn, 4:6].set(params["cls_cell"][0])
    b2_all = jnp.zeros((OUT_LANES,), jnp.float32)
    b2_all = b2_all.at[0:2].set(params["pair_row_pred"][1])
    b2_all = b2_all.at[2:4].set(params["pair_col_pred"][1])
    b2_all = b2_all.at[4:6].set(params["cls_cell"][1])
    return w1_ab, b1_all, w2_all.astype(jnp.bfloat16), b2_all.reshape(1, -1)


# -----------------------------------------------------------------------------
# GraphTableNet.forward (cnn_flag=False path)
# -----------------------------------------------------------------------------
def graph_table_net_forward(params, images, cell_boxes, height, width):
    w1_ab, b1_all, w2_all, b2_all = _fuse_head_params(params)

    # GraphBase node path + fused first-layer projections (Pallas kernel A)
    box_feat = get_box_feat(cell_boxes, height, width)
    proj = node_projection(
        box_feat,
        params["box_emb"][0], params["box_emb"][1],
        params["fusion_linear"][0], params["fusion_linear"][1],
        w1_ab,
    )
    g3 = proj.shape[1] // 2
    proj_a, proj_b = proj[:, :g3], proj[:, g3:]
    # TODO(synk): graph modules (DGCNN/GravNet) not provided -> identity graph layer,
    #             so feat_row == feat_col == feat_cell == fusion_feat and one fused
    #             pair head serves all three heads.

    # pair sampling (targets=None branch)
    (pair_row_t, pair_row, pair_col_t, pair_col,
     pair_cell_t, pair_cell) = get_sampling(cell_boxes)

    p = pair_row.shape[0]
    if p == 0:
        # every cell_boxes entry has <2 boxes -> no pairs; mirror empty outputs
        empty_scores = jnp.zeros((0, 2), jnp.float32)
        empty_pred = jnp.zeros((0,), jnp.int32)
        return {
            "pair_row_score_list": empty_scores, "pair_row": pair_row,
            "pair_row_pred": empty_pred, "pair_row_target": pair_row_t,
            "pair_col": pair_col, "pair_col_score_list": empty_scores,
            "pair_col_pred": empty_pred, "pair_col_target": pair_col_t,
            "pair_cell": pair_cell, "pair_cell_score_list": empty_scores,
            "pair_cell_pred": empty_pred, "pair_cell_target": pair_cell_t,
        }

    tile = _choose_pair_tile(p)
    p_pad = pl.cdiv(p, tile) * tile
    idx = np.zeros((p_pad, 2), np.int32)        # pad the *indices*, not the features
    idx[:p] = pair_row                          # (row/col/cell pairs are identical here)

    # deterministic analogue of `flag = random.random() < 0.5` -> keep (i, j) order.
    # Pre-sum the two gathered streams (f32 add, emitted bf16) so kernel B reads
    # ONE [p_pad, 384] input instead of two (halves its dominant HBM stream).
    pa = jnp.take(proj_a, jnp.asarray(idx[:, 0]), axis=0).astype(jnp.float32)
    pb = jnp.take(proj_b, jnp.asarray(idx[:, 1]), axis=0).astype(jnp.float32)
    pair_sum = (pa + pb).astype(jnp.bfloat16)                    # [p_pad, 3g]

    # single fused pair head (Pallas kernel B)
    scores = fused_pair_head(pair_sum, b1_all, w2_all, b2_all, tile=tile)
    scores = scores[:p].astype(jnp.float32)
    row_scores = scores[:, 0:2]
    col_scores = scores[:, 2:4]
    cell_scores = scores[:, 4:6]

    data = {
        "pair_row_score_list": row_scores,
        "pair_row": pair_row,
        "pair_row_pred": jnp.argmax(row_scores, axis=1),
        "pair_row_target": pair_row_t,
        "pair_col": pair_col,
        "pair_col_score_list": col_scores,
        "pair_col_pred": jnp.argmax(col_scores, axis=1),
        "pair_col_target": pair_col_t,
        "pair_cell": pair_cell,
        "pair_cell_score_list": cell_scores,
        "pair_cell_pred": jnp.argmax(cell_scores, axis=1),
        "pair_cell_target": pair_cell_t,
    }
    return data


if __name__ == "__main__":
    key = jax.random.PRNGKey(0)
    k_img, k_box, k_par = jax.random.split(key, 3)

    HEIGHT, WIDTH = 512, 512
    B, N_BOX = 2, 16

    # images are unused on the cnn_flag=False path (kept for interface parity)
    images = jax.random.normal(k_img, (B, 3, 64, 64), jnp.float32)

    # deterministic cell boxes: (x1, y1, x2, y2) within the image extent
    kb = jax.random.split(k_box, B)
    cell_boxes = []
    for i in range(B):
        xy = jax.random.uniform(kb[i], (N_BOX, 2), minval=0.0, maxval=400.0)
        wh = jax.random.uniform(jax.random.fold_in(kb[i], 1), (N_BOX, 2),
                                minval=8.0, maxval=100.0)
        cell_boxes.append(jnp.concatenate([xy, xy + wh], axis=1))

    params = init_params(k_par, box_emb_feat=128, gcn_out_feat=128)

    data = graph_table_net_forward(params, images, cell_boxes, HEIGHT, WIDTH)
    jax.block_until_ready(data["pair_row_score_list"])
    jax.block_until_ready(data["pair_col_score_list"])
    jax.block_until_ready(data["pair_cell_score_list"])

    # light sanity checks
    n_pairs = B * (N_BOX * (N_BOX - 1) // 2)
    assert data["pair_row_score_list"].shape == (n_pairs, 2)
    assert data["pair_col_score_list"].shape == (n_pairs, 2)
    assert data["pair_cell_score_list"].shape == (n_pairs, 2)
    assert data["pair_cell_pred"].shape == (n_pairs,)
    assert bool(jnp.all(jnp.isfinite(data["pair_row_score_list"])))
    assert bool(jnp.all(jnp.isfinite(data["pair_cell_score_list"])))
    print("KERNEL_OK")
</pallas_src>

<mosaic_0001>
module attributes {stable_mosaic.version = 11 : i64} {
  func.func @node_proj_kernel(%arg0: i32, %arg1: memref<32x4xf32, #tpu.memory_space<vmem>>, %arg2: memref<4x128xf32, #tpu.memory_space<vmem>>, %arg3: memref<1x128xf32, #tpu.memory_space<vmem>>, %arg4: memref<128x128xbf16, #tpu.memory_space<vmem>>, %arg5: memref<1x128xf32, #tpu.memory_space<vmem>>, %arg6: memref<128x768xbf16, #tpu.memory_space<vmem>>, %arg7: memref<32x768xbf16, #tpu.memory_space<vmem>>) attributes {dimension_semantics = [#tpu.dimension_semantics<parallel>], iteration_bounds = array<i64: 1>, scalar_prefetch = 0 : i64, scratch_operands = 0 : i64, tpu.core_type = #tpu.core_type<tc>, window_params = [{transform_indices = @transform_0, window_bounds = array<i64: 32, 4>}, {pipeline_mode = #tpu.pipeline_mode<synchronous>, transform_indices = @transform_1, window_bounds = array<i64: 4, 128>}, {pipeline_mode = #tpu.pipeline_mode<synchronous>, transform_indices = @transform_2, window_bounds = array<i64: 1, 128>}, {pipeline_mode = #tpu.pipeline_mode<synchronous>, transform_indices = @transform_3, window_bounds = array<i64: 128, 128>}, {pipeline_mode = #tpu.pipeline_mode<synchronous>, transform_indices = @transform_4, window_bounds = array<i64: 1, 128>}, {pipeline_mode = #tpu.pipeline_mode<synchronous>, transform_indices = @transform_5, window_bounds = array<i64: 128, 768>}, {transform_indices = @transform_6, window_bounds = array<i64: 32, 768>}]} {
    %c0 = arith.constant 0 : index
    %c0_0 = arith.constant 0 : index
    %0 = vector.load %arg1[%c0, %c0_0] : memref<32x4xf32, #tpu.memory_space<vmem>>, vector<32x4xf32>
    %c0_1 = arith.constant 0 : index
    %c0_2 = arith.constant 0 : index
    %1 = vector.load %arg2[%c0_1, %c0_2] : memref<4x128xf32, #tpu.memory_space<vmem>>, vector<4x128xf32>
    %2 = vector.extract_strided_slice %0 {offsets = [0, 0], sizes = [32, 1], strides = [1, 1]} : vector<32x4xf32> to vector<32x1xf32>
    %3 = vector.extract_strided_slice %1 {offsets = [0, 0], sizes = [1, 128], strides = [1, 1]} : vector<4x128xf32> to vector<1x128xf32>
    %4 = vector.broadcast %2 : vector<32x1xf32> to vector<32x128xf32>
    %5 = vector.broadcast %3 : vector<1x128xf32> to vector<32x128xf32>
    %6 = arith.mulf %4, %5 : vector<32x128xf32>
    %7 = vector.extract_strided_slice %0 {offsets = [0, 1], sizes = [32, 1], strides = [1, 1]} : vector<32x4xf32> to vector<32x1xf32>
    %8 = vector.extract_strided_slice %1 {offsets = [1, 0], sizes = [1, 128], strides = [1, 1]} : vector<4x128xf32> to vector<1x128xf32>
    %9 = vector.broadcast %7 : vector<32x1xf32> to vector<32x128xf32>
    %10 = vector.broadcast %8 : vector<1x128xf32> to vector<32x128xf32>
    %11 = arith.mulf %9, %10 : vector<32x128xf32>
    %12 = arith.addf %6, %11 : vector<32x128xf32>
    %13 = vector.extract_strided_slice %0 {offsets = [0, 2], sizes = [32, 1], strides = [1, 1]} : vector<32x4xf32> to vector<32x1xf32>
    %14 = vector.extract_strided_slice %1 {offsets = [2, 0], sizes = [1, 128], strides = [1, 1]} : vector<4x128xf32> to vector<1x128xf32>
    %15 = vector.broadcast %13 : vector<32x1xf32> to vector<32x128xf32>
    %16 = vector.broadcast %14 : vector<1x128xf32> to vector<32x128xf32>
    %17 = arith.mulf %15, %16 : vector<32x128xf32>
    %18 = arith.addf %12, %17 : vector<32x128xf32>
    %19 = vector.extract_strided_slice %0 {offsets = [0, 3], sizes = [32, 1], strides = [1, 1]} : vector<32x4xf32> to vector<32x1xf32>
    %20 = vector.extract_strided_slice %1 {offsets = [3, 0], sizes = [1, 128], strides = [1, 1]} : vector<4x128xf32> to vector<1x128xf32>
    %21 = vector.broadcast %19 : vector<32x1xf32> to vector<32x128xf32>
    %22 = vector.broadcast %20 : vector<1x128xf32> to vector<32x128xf32>
    %23 = arith.mulf %21, %22 : vector<32x128xf32>
    %24 = arith.addf %18, %23 : vector<32x128xf32>
    %c0_3 = arith.constant 0 : index
    %c0_4 = arith.constant 0 : index
    %25 = vector.load %arg3[%c0_3, %c0_4] : memref<1x128xf32, #tpu.memory_space<vmem>>, vector<1x128xf32>
    %26 = vector.broadcast %25 : vector<1x128xf32> to vector<32x128xf32>
    %27 = arith.addf %24, %26 : vector<32x128xf32>
    %cst = arith.constant 0.000000e+00 : f32
    %28 = vector.broadcast %cst : f32 to vector<32x128xf32>
    %29 = arith.maximumf %27, %28 : vector<32x128xf32>
    %30 = arith.truncf %29 : vector<32x128xf32> to vector<32x128xbf16>
    %c0_5 = arith.constant 0 : index
    %c0_6 = arith.constant 0 : index
    %31 = vector.load %arg4[%c0_5, %c0_6] : memref<128x128xbf16, #tpu.memory_space<vmem>>, vector<128x128xbf16>
    %cst_7 = arith.constant dense<0.000000e+00> : vector<32x128xf32>
    %32 = tpu.matmul %30, %31, %cst_7 {dimension_numbers = #tpu.dot_dimension_numbers<[1], [0], [0], [1], [0, 0, 1, 1], [], []>} : vector<32x128xbf16>, vector<128x128xbf16>, vector<32x128xf32> -> vector<32x128xf32>
    %c0_8 = arith.constant 0 : index
    %c0_9 = arith.constant 0 : index
    %33 = vector.load %arg5[%c0_8, %c0_9] : memref<1x128xf32, #tpu.memory_space<vmem>>, vector<1x128xf32>
    %34 = vector.broadcast %33 : vector<1x128xf32> to vector<32x128xf32>
    %35 = arith.addf %32, %34 : vector<32x128xf32>
    %36 = arith.truncf %35 : vector<32x128xf32> to vector<32x128xbf16>
    %c0_10 = arith.constant 0 : index
    %c0_11 = arith.constant 0 : index
    %37 = vector.load %arg6[%c0_10, %c0_11] : memref<128x768xbf16, #tpu.memory_space<vmem>>, vector<128x768xbf16>
    %cst_12 = arith.constant dense<0.000000e+00> : vector<32x768xf32>
    %38 = tpu.matmul %36, %37, %cst_12 {dimension_numbers = #tpu.dot_dimension_numbers<[1], [0], [0], [1], [0, 0, 1, 1], [], []>} : vector<32x128xbf16>, vector<128x768xbf16>, vector<32x768xf32> -> vector<32x768xf32>
    %39 = arith.truncf %38 : vector<32x768xf32> to vector<32x768xbf16>
    %c0_13 = arith.constant 0 : index
    %c0_14 = arith.constant 0 : index
    %40 = vector.load %arg7[%c0_13, %c0_14] : memref<32x768xbf16, #tpu.memory_space<vmem>>, vector<32x768xbf16>
    tpu.vector_store %arg7[%c0_13, %c0_14], %39 {strides = array<i32>} : memref<32x768xbf16, #tpu.memory_space<vmem>>, vector<32x768xbf16>,
    return
  }
  func.func @transform_0(%arg0: i32) -> (i32, i32) {
    %c0_i32 = arith.constant 0 : i32
    %c0_i32_0 = arith.constant 0 : i32
    return %arg0, %c0_i32 : i32, i32
  }
  func.func @transform_1(%arg0: i32) -> (i32, i32) {
    %c0_i32 = arith.constant 0 : i32
    %c0_i32_0 = arith.constant 0 : i32
    %c0_i32_1 = arith.constant 0 : i32
    return %c0_i32, %c0_i32_0 : i32, i32
  }
  func.func @transform_2(%arg0: i32) -> (i32, i32) {
    %c0_i32 = arith.constant 0 : i32
    %c0_i32_0 = arith.constant 0 : i32
    %c0_i32_1 = arith.constant 0 : i32
    return %c0_i32, %c0_i32_0 : i32, i32
  }
  func.func @transform_3(%arg0: i32) -> (i32, i32) {
    %c0_i32 = arith.constant 0 : i32
    %c0_i32_0 = arith.constant 0 : i32
    %c0_i32_1 = arith.constant 0 : i32
    return %c0_i32, %c0_i32_0 : i32, i32
  }
  func.func @transform_4(%arg0: i32) -> (i32, i32) {
    %c0_i32 = arith.constant 0 : i32
    %c0_i32_0 = arith.constant 0 : i32
    %c0_i32_1 = arith.constant 0 : i32
    return %c0_i32, %c0_i32_0 : i32, i32
  }
  func.func @transform_5(%arg0: i32) -> (i32, i32) {
    %c0_i32 = arith.constant 0 : i32
    %c0_i32_0 = arith.constant 0 : i32
    %c0_i32_1 = arith.constant 0 : i32
    return %c0_i32, %c0_i32_0 : i32, i32
  }
  func.func @transform_6(%arg0: i32) -> (i32, i32) {
    %c0_i32 = arith.constant 0 : i32
    %c0_i32_0 = arith.constant 0 : i32
    return %arg0, %c0_i32 : i32, i32
  }
}

</mosaic_0001>

<llo_original>
// kernel: tpu_custom_call.1
$region0: #{tpu_custom_call.1}
  #allocation0 [shape = 'u32[]', space=smem, size = 0x4, offset = 0x4, fixed_abs, tag = 'smem constant byte address 0x4 - core index']
  #allocation1 [shape = 'u32[144,128]{1,0:T(1,128)}', space=vmem, size = 0x12000, scoped, tag = 'internal scratch']
  %s0 = inlined_call_operand.vmem [shape: f32[32,4], index: 0, kind: input, shape index: {}]
  %s1 = inlined_call_operand.vmem [shape: f32[4,128], index: 1, kind: input, shape index: {}]
  %s2 = inlined_call_operand.vmem [shape: f32[1,128], index: 2, kind: input, shape index: {}]
  %s3 = inlined_call_operand.hbm [shape: bf16[128,128], index: 3, kind: input, shape index: {}]
  %s4 = inlined_call_operand.vmem [shape: f32[1,128], index: 4, kind: input, shape index: {}]
  %s5 = inlined_call_operand.hbm [shape: bf16[128,768], index: 5, kind: input, shape index: {}]
  %s6 = inlined_call_operand.hbm [shape: bf16[32,768], index: 6, kind: output, shape index: {}]
  %s7 = sld [smem:[#allocation0]]
  $region42: #{tpu_custom_call.1} parent=0
    _
  %s9 = ssub.s32 1, %s7
  %s10 = scalar_select 0, %s9, %s7
  $region1: #{tpu_custom_call.1} parent=0
    #allocation2 [shape = 'u8[32768]{0}', space=vmem, size = 0x8000, scoped, tag = 'input window, operand 3, single buffered']
    #allocation3 [shape = 's32[1]{0}', space=sflag, size = 0x4, scoped, tag = 'scoped memory for tpu_custom_call.1']
    #allocation4 [shape = 's32[1]{0}', space=sflag, size = 0x4, scoped, tag = 'scoped memory for tpu_custom_call.1']
    #allocation5 [shape = 'u8[196608]{0}', space=vmem, size = 0x30000, scoped, tag = 'input window, operand 5, single buffered']
    #allocation6 [shape = 's32[1]{0}', space=sflag, size = 0x4, scoped, tag = 'scoped memory for tpu_custom_call.1']
    #allocation7 [shape = 'u8[49152]{0}', space=vmem, size = 0xc000, scoped, tag = 'output window, operand 0, single buffered']
    %11 = vsyncpa [#allocation3], 0
    %12 = vsyncpa [#allocation6], 0
    %13 = vsyncpa [#allocation4], 0
    // Predicated region
    $region2: #{tpu_custom_call.1} parent=1 // pred_check
      _
    $region3: #{tpu_custom_call.1} parent=1 // pred_check_branch
      %15 = sbr.rel (0) target = $region5
    $region4: #{tpu_custom_call.1} parent=1 // pred_region
      _
    $region5: #{tpu_custom_call.1} parent=1 // pred_fallthru
      _
    // Predicated region
    $region6: #{tpu_custom_call.1} parent=1 // pred_check
      _
    $region7: #{tpu_custom_call.1} parent=1 // pred_check_branch
      %17 = sbr.rel (0) target = $region9
    $region8: #{tpu_custom_call.1} parent=1 // pred_region
      _
    $region9: #{tpu_custom_call.1} parent=1 // pred_fallthru
      _
    // Predicated region
    $region10: #{tpu_custom_call.1} parent=1 // pred_check
      _
    $region11: #{tpu_custom_call.1} parent=1 // pred_check_branch
      %19 = sbr.rel (0) target = $region13
    $region12: #{tpu_custom_call.1} parent=1 // pred_region
      _
    $region13: #{tpu_custom_call.1} parent=1 // pred_fallthru
      _
    // Predicated region
    $region14: #{tpu_custom_call.1} parent=1 // pred_check
      _
    $region15: #{tpu_custom_call.1} parent=1 // pred_check_branch
      %21 = sbr.rel (0) target = $region17
    $region16: #{tpu_custom_call.1} parent=1 // pred_region
      %s23 = ssub.s32 1024, 1024
      %24 = vsyncadd [#allocation3], %s23
      %s25 = sshll.u32 [#allocation2], 4
      %s26 = int_to_ptr.vmem [resolvable:$true] %s25
      %31 = dma.hbm_to_vmem [thread:$0]  %s3, 1024, %s26, [#allocation3], 64, 64, 4
    $region17: #{tpu_custom_call.1} parent=1 // pred_fallthru
      _
    // Predicated region
    $region18: #{tpu_custom_call.1} parent=1 // pred_check
      _
    $region19: #{tpu_custom_call.1} parent=1 // pred_check_branch
      %33 = sbr.rel (0) target = $region21
    $region20: #{tpu_custom_call.1} parent=1 // pred_region
      _
    $region21: #{tpu_custom_call.1} parent=1 // pred_fallthru
      _
    // Predicated region
    $region22: #{tpu_custom_call.1} parent=1 // pred_check
      _
    $region23: #{tpu_custom_call.1} parent=1 // pred_check_branch
      %35 = sbr.rel (0) target = $region25
    $region24: #{tpu_custom_call.1} parent=1 // pred_region
      %s37 = ssub.s32 6144, 6144
      %38 = vsyncadd [#allocation6], %s37
      %s39 = sshll.u32 [#allocation5], 4
      %s40 = int_to_ptr.vmem [resolvable:$true] %s39
      %45 = dma.hbm_to_vmem [thread:$0]  %s5, 6144, %s40, [#allocation6], 384, 384, 24
    $region25: #{tpu_custom_call.1} parent=1 // pred_fallthru
      _
    // Predicated region
    $region26: #{tpu_custom_call.1} parent=1 // pred_check
      _
    $region27: #{tpu_custom_call.1} parent=1 // pred_check_branch
      %47 = sbr.rel (0) target = $region29
    $region28: #{tpu_custom_call.1} parent=1 // pred_region
      %48 = dma.done [#allocation3], 1024
    $region29: #{tpu_custom_call.1} parent=1 // pred_fallthru
      _
    // Predicated region
    $region30: #{tpu_custom_call.1} parent=1 // pred_check
      _
    $region31: #{tpu_custom_call.1} parent=1 // pred_check_branch
      %50 = sbr.rel (0) target = $region33
    $region32: #{tpu_custom_call.1} parent=1 // pred_region
      %51 = dma.done [#allocation6], 6144
    $region33: #{tpu_custom_call.1} parent=1 // pred_fallthru
      _
    %v53 = vld [vmem:[%s0] sm:$0xff]
    %v54 = vld [vmem:[%s0 + $0x8] sm:$0xff]
    %v55 = vld [vmem:[%s0 + $0x10] sm:$0xff]
    %v56 = vld [vmem:[%s0 + $0x18] sm:$0xff]
    %v57 = vld [vmem:[%s1] sm:$0xf]
    %59 = vset.pattern.permute.xlu0 0
    %60 = vperm.xlu0 %59, %v53
    %v61 = vpop.permute.xlu0 %60
    %64 = vset.pattern.permute.xlu0 0
    %65 = vperm.xlu0 %64, %v54
    %v66 = vpop.permute.xlu0 %65
    %69 = vset.pattern.permute.xlu0 0
    %70 = vperm.xlu0 %69, %v55
    %v71 = vpop.permute.xlu0 %70
    %74 = vset.pattern.permute.xlu0 0
    %75 = vperm.xlu0 %74, %v56
    %v76 = vpop.permute.xlu0 %75
    %v78 = vlaneseq
    %v79 = vshrl.u32 %v78, 7
    %v80 = vsub.s32 0, %v79
    %v81 = vrot.slane %v57, %v80
    %v82 = vmul.f32 %v61, %v81
    %v83 = vmul.f32 %v66, %v81
    %v84 = vmul.f32 %v71, %v81
    %v85 = vmul.f32 %v76, %v81
    %86 = vset.pattern.permute.xlu0 1
    %87 = vperm.xlu0 %86, %v53
    %v88 = vpop.permute.xlu0 %87
    %90 = vset.pattern.permute.xlu0 1
    %91 = vperm.xlu0 %90, %v54
    %v92 = vpop.permute.xlu0 %91
    %94 = vset.pattern.permute.xlu0 1
    %95 = vperm.xlu0 %94, %v55
    %v96 = vpop.permute.xlu0 %95
    %98 = vset.pattern.permute.xlu0 1
    %99 = vperm.xlu0 %98, %v56
    %v100 = vpop.permute.xlu0 %99
    %v102 = vlaneseq
    %v103 = vshrl.u32 %v102, 7
    %v104 = vsub.s32 1, %v103
    %v105 = vrot.slane %v57, %v104
    %v106 = vmul.f32 %v88, %v105
    %v107 = vmul.f32 %v92, %v105
    %v108 = vmul.f32 %v96, %v105
    %v109 = vmul.f32 %v100, %v105
    %v110 = vadd.f32 %v82, %v106
    %v111 = vadd.f32 %v83, %v107
    %v112 = vadd.f32 %v84, %v108
    %v113 = vadd.f32 %v85, %v109
    %114 = vset.pattern.permute.xlu0 2
    %115 = vperm.xlu0 %114, %v53
    %v116 = vpop.permute.xlu0 %115
    %118 = vset.pattern.permute.xlu0 2
    %119 = vperm.xlu0 %118, %v54
    %v120 = vpop.permute.xlu0 %119
    %122 = vset.pattern.permute.xlu0 2
    %123 = vperm.xlu0 %122, %v55
    %v124 = vpop.permute.xlu0 %123
    %126 = vset.pattern.permute.xlu0 2
    %127 = vperm.xlu0 %126, %v56
    %v128 = vpop.permute.xlu0 %127
    %v130 = vlaneseq
    %v131 = vshrl.u32 %v130, 7
    %v132 = vsub.s32 2, %v131
    %v133 = vrot.slane %v57, %v132
    %v134 = vmul.f32 %v116, %v133
    %v135 = vmul.f32 %v120, %v133
    %v136 = vmul.f32 %v124, %v133
    %v137 = vmul.f32 %v128, %v133
    %v138 = vadd.f32 %v110, %v134
    %v139 = vadd.f32 %v111, %v135
    %v140 = vadd.f32 %v112, %v136
    %v141 = vadd.f32 %v113, %v137
    %142 = vset.pattern.permute.xlu0 3
    %143 = vperm.xlu0 %142, %v53
    %v144 = vpop.permute.xlu0 %143
    %146 = vset.pattern.permute.xlu0 3
    %147 = vperm.xlu0 %146, %v54
    %v148 = vpop.permute.xlu0 %147
    %150 = vset.pattern.permute.xlu0 3
    %151 = vperm.xlu0 %150, %v55
    %v152 = vpop.permute.xlu0 %151
    %154 = vset.pattern.permute.xlu0 3
    %155 = vperm.xlu0 %154, %v56
    %v156 = vpop.permute.xlu0 %155
    %v158 = vlaneseq
    %v159 = vshrl.u32 %v158, 7
    %v160 = vsub.s32 3, %v159
    %v161 = vrot.slane %v57, %v160
    %v162 = vmul.f32 %v144, %v161
    %v163 = vmul.f32 %v148, %v161
    %v164 = vmul.f32 %v152, %v161
    %v165 = vmul.f32 %v156, %v161
    %v166 = vadd.f32 %v138, %v162
    %v167 = vadd.f32 %v139, %v163
    %v168 = vadd.f32 %v140, %v164
    %v169 = vadd.f32 %v141, %v165
    %v170 = vld [vmem:[%s2] sm:$0x1]
    %v172 = vlaneseq
    %v173 = vshrl.u32 %v172, 7
    %v174 = vsub.s32 0, %v173
    %v175 = vrot.slane %v170, %v174
    %v177 = vadd.f32 %v166, %v175
    %v178 = vadd.f32 %v167, %v175
    %v179 = vadd.f32 %v168, %v175
    %v180 = vadd.f32 %v169, %v175
    %v181 = vmax.f32 %v177, 0.0
    %v182 = vmax.f32 %v178, 0.0
    %v183 = vmax.f32 %v179, 0.0
    %v184 = vmax.f32 %v180, 0.0
    %v185 = vpack.c.bf16 %v182, %v181
    %v186 = vpack.c.bf16 %v184, %v183
    %v187 = vld [vmem:[#allocation2] sm:$0xf]
    %v188 = vld [vmem:[#allocation2 + $0x4] sm:$0xf]
    %v189 = vld [vmem:[#allocation2 + $0x8] sm:$0xf]
    %v190 = vld [vmem:[#allocation2 + $0xc] sm:$0xf]
    %v191 = vld [vmem:[#allocation2 + $0x10] sm:$0xf]
    %v192 = vld [vmem:[#allocation2 + $0x14] sm:$0xf]
    %v193 = vld [vmem:[#allocation2 + $0x18] sm:$0xf]
    %v194 = vld [vmem:[#allocation2 + $0x1c] sm:$0xf]
    %v195 = vld [vmem:[#allocation2 + $0x20] sm:$0xf]
    %v196 = vld [vmem:[#allocation2 + $0x24] sm:$0xf]
    %v197 = vld [vmem:[#allocation2 + $0x28] sm:$0xf]
    %v198 = vld [vmem:[#allocation2 + $0x2c] sm:$0xf]
    %v199 = vld [vmem:[#allocation2 + $0x30] sm:$0xf]
    %v200 = vld [vmem:[#allocation2 + $0x34] sm:$0xf]
    %v201 = vld [vmem:[#allocation2 + $0x38] sm:$0xf]
    %v202 = vld [vmem:[#allocation2 + $0x3c] sm:$0xf]
    %v203 = vld [vmem:[%s4] sm:$0x1]
    %v205 = vlaneseq
    %v206 = vshrl.u32 %v205, 7
    %v207 = vsub.s32 0, %v206
    %v208 = vrot.slane %v203, %v207
    %v226 = vunpack.c.l.b16 %v187
    %v227 = vunpack.c.l.b16 %v188
    %v228 = vunpack.c.l.b16 %v189
    %v229 = vunpack.c.l.b16 %v190
    %v230 = vunpack.c.l.b16 %v191
    %v231 = vunpack.c.l.b16 %v192
    %v232 = vunpack.c.l.b16 %v193
    %v233 = vunpack.c.l.b16 %v194
    %v234 = vunpack.c.l.b16 %v195
    %v235 = vunpack.c.l.b16 %v196
    %v236 = vunpack.c.l.b16 %v197
    %v237 = vunpack.c.l.b16 %v198
    %v238 = vunpack.c.l.b16 %v199
    %v239 = vunpack.c.l.b16 %v200
    %v240 = vunpack.c.l.b16 %v201
    %v241 = vunpack.c.l.b16 %v202
    %v242 = vpack.c.b16 %v227, %v226
    %v243 = vpack.c.b16 %v229, %v228
    %v244 = vpack.c.b16 %v231, %v230
    %v245 = vpack.c.b16 %v233, %v232
    %v246 = vpack.c.b16 %v235, %v234
    %v247 = vpack.c.b16 %v237, %v236
    %v248 = vpack.c.b16 %v239, %v238
    %v249 = vpack.c.b16 %v241, %v240
    %258 = vmatprep.subr.bf16.mxu0 0
    %259 = vmatpush1.bf16.msra.mxu0 %v242
    %260 = vmatprep.subr.bf16.mxu0 0
    %261 = vmatpush1.bf16.msra.mxu0 %v243
    %262 = vmatprep.subr.bf16.mxu0 0
    %263 = vmatpush1.bf16.msra.mxu0 %v244
    %264 = vmatprep.subr.bf16.mxu0 0
    %265 = vmatpush1.bf16.msra.mxu0 %v245
    %266 = vmatprep.subr.bf16.mxu0 0
    %267 = vmatpush1.bf16.msra.mxu0 %v246
    %268 = vmatprep.subr.bf16.mxu0 0
    %269 = vmatpush1.bf16.msra.mxu0 %v247
    %270 = vmatprep.subr.bf16.mxu0 0
    %271 = vmatpush1.bf16.msra.mxu0 %v248
    %272 = vmatprep.subr.bf16.mxu0 0
    %273 = vmatpush1.bf16.msra.mxu0 %v249
    %274 = vmatprep.subr.bf16.mxu0 0
    %275 = vmatpush1.bf16.msra.mxu0 0
    %276 = vmatprep.subr.bf16.mxu0 0
    %277 = vmatpush1.bf16.msra.mxu0 0
    %278 = vmatprep.subr.bf16.mxu0 0
    %279 = vmatpush1.bf16.msra.mxu0 0
    %280 = vmatprep.subr.bf16.mxu0 0
    %281 = vmatpush1.bf16.msra.mxu0 0
    %282 = vmatprep.subr.bf16.mxu0 0
    %283 = vmatpush1.bf16.msra.mxu0 0
    %284 = vmatprep.subr.bf16.mxu0 0
    %285 = vmatpush1.bf16.msra.mxu0 0
    %286 = vmatprep.subr.bf16.mxu0 0
    %287 = vmatpush1.bf16.msra.mxu0 0
    %288 = vmatprep.subr.bf16.mxu0 0
    %289 = vmatpush1.bf16.msra.mxu0 0
    %290 = vmatprep.mubr.bf16.mxu0 0
    %291 = vmatmul.mubr.bf16.gmra.mrb[0].mxu0 %v185
    %v292 = vpop.f32.mrb[0].mxu0
    %v293 = vadd.f32 %v208, %v292
    %v294 = vpop.f32.mrb[0].mxu0
    %v295 = vpop.f32.mrb[0].mxu0
    %v296 = vadd.f32 %v208, %v295
    %v297 = vpop.f32.mrb[0].mxu0
    %298 = vmatprep.mubr.bf16.mxu0 0
    %299 = vmatmul.mubr.bf16.gmra.mrb[0].mxu0 %v186
    %v300 = vpop.f32.mrb[0].mxu0
    %v301 = vadd.f32 %v208, %v300
    %v302 = vpop.f32.mrb[0].mxu0
    %v303 = vpop.f32.mrb[0].mxu0
    %v304 = vadd.f32 %v208, %v303
    %v305 = vpop.f32.mrb[0].mxu0
    %306 = vdwg.mxu0
    %v307 = vpack.c.bf16 %v296, %v293
    %v308 = vpack.c.bf16 %v304, %v301
    %v309 = vld [vmem:[#allocation5] sm:$0xff]
    %v310 = vld [vmem:[#allocation5 + $0x8] sm:$0xff]
    %v311 = vld [vmem:[#allocation5 + $0x10] sm:$0xff]
    %v312 = vld [vmem:[#allocation5 + $0x18] sm:$0xff]
    %v313 = vld [vmem:[#allocation5 + $0x20] sm:$0xff]
    %v314 = vld [vmem:[#allocation5 + $0x28] sm:$0xff]
    %v315 = vld [vmem:[#allocation5 + $0x30] sm:$0xff]
    %v316 = vld [vmem:[#allocation5 + $0x38] sm:$0xff]
    %v317 = vld [vmem:[#allocation5 + $0x40] sm:$0xff]
    %v318 = vld [vmem:[#allocation5 + $0x48] sm:$0xff]
    %v319 = vld [vmem:[#allocation5 + $0x50] sm:$0xff]
    %v320 = vld [vmem:[#allocation5 + $0x58] sm:$0xff]
    %v321 = vld [vmem:[#allocation5 + $0x60] sm:$0xff]
    %v322 = vld [vmem:[#allocation5 + $0x68] sm:$0xff]
    %v323 = vld [vmem:[#allocation5 + $0x70] sm:$0xff]
    %v324 = vld [vmem:[#allocation5 + $0x78] sm:$0xff]
    %v325 = vld [vmem:[#allocation5 + $0x80] sm:$0xff]
    %v326 = vld [vmem:[#allocation5 + $0x88] sm:$0xff]
    %v327 = vld [vmem:[#allocation5 + $0x90] sm:$0xff]
    %v328 = vld [vmem:[#allocation5 + $0x98] sm:$0xff]
    %v329 = vld [vmem:[#allocation5 + $0xa0] sm:$0xff]
    %v330 = vld [vmem:[#allocation5 + $0xa8] sm:$0xff]
    %v331 = vld [vmem:[#allocation5 + $0xb0] sm:$0xff]
    %v332 = vld [vmem:[#allocation5 + $0xb8] sm:$0xff]
    %v333 = vld [vmem:[#allocation5 + $0xc0] sm:$0xff]
    %v334 = vld [vmem:[#allocation5 + $0xc8] sm:$0xff]
    %v335 = vld [vmem:[#allocation5 + $0xd0] sm:$0xff]
    %v336 = vld [vmem:[#allocation5 + $0xd8] sm:$0xff]
    %v337 = vld [vmem:[#allocation5 + $0xe0] sm:$0xff]
    %v338 = vld [vmem:[#allocation5 + $0xe8] sm:$0xff]
    %v339 = vld [vmem:[#allocation5 + $0xf0] sm:$0xff]
    %v340 = vld [vmem:[#allocation5 + $0xf8] sm:$0xff]
    %v341 = vld [vmem:[#allocation5 + $0x100] sm:$0xff]
    %v342 = vld [vmem:[#allocation5 + $0x108] sm:$0xff]
    %v343 = vld [vmem:[#allocation5 + $0x110] sm:$0xff]
    %v344 = vld [vmem:[#allocation5 + $0x118] sm:$0xff]
    %v345 = vld [vmem:[#allocation5 + $0x120] sm:$0xff]
    %v346 = vld [vmem:[#allocation5 + $0x128] sm:$0xff]
    %v347 = vld [vmem:[#allocation5 + $0x130] sm:$0xff]
    %v348 = vld [vmem:[#allocation5 + $0x138] sm:$0xff]
    %v349 = vld [vmem:[#allocation5 + $0x140] sm:$0xff]
    %v350 = vld [vmem:[#allocation5 + $0x148] sm:$0xff]
    %v351 = vld [vmem:[#allocation5 + $0x150] sm:$0xff]
    %v352 = vld [vmem:[#allocation5 + $0x158] sm:$0xff]
    %v353 = vld [vmem:[#allocation5 + $0x160] sm:$0xff]
    %v354 = vld [vmem:[#allocation5 + $0x168] sm:$0xff]
    %v355 = vld [vmem:[#allocation5 + $0x170] sm:$0xff]
    %v356 = vld [vmem:[#allocation5 + $0x178] sm:$0xff]
    %v405 = vunpack.c.l.b16 %v309
    %v406 = vunpack.c.h.b16 %v309
    %v407 = vunpack.c.l.b16 %v310
    %v408 = vunpack.c.h.b16 %v310
    %v409 = vunpack.c.l.b16 %v311
    %v410 = vunpack.c.h.b16 %v311
    %v411 = vunpack.c.l.b16 %v312
    %v412 = vunpack.c.h.b16 %v312
    %v413 = vunpack.c.l.b16 %v313
    %v414 = vunpack.c.h.b16 %v313
    %v415 = vunpack.c.l.b16 %v314
    %v416 = vunpack.c.h.b16 %v314
    %v417 = vunpack.c.l.b16 %v315
    %v418 = vunpack.c.h.b16 %v315
    %v419 = vunpack.c.l.b16 %v316
    %v420 = vunpack.c.h.b16 %v316
    %v421 = vunpack.c.l.b16 %v317
    %v422 = vunpack.c.h.b16 %v317
    %v423 = vunpack.c.l.b16 %v318
    %v424 = vunpack.c.h.b16 %v318
    %v425 = vunpack.c.l.b16 %v319
    %v426 = vunpack.c.h.b16 %v319
    %v427 = vunpack.c.l.b16 %v320
    %v428 = vunpack.c.h.b16 %v320
    %v429 = vunpack.c.l.b16 %v321
    %v430 = vunpack.c.h.b16 %v321
    %v431 = vunpack.c.l.b16 %v322
    %v432 = vunpack.c.h.b16 %v322
    %v433 = vunpack.c.l.b16 %v323
    %v434 = vunpack.c.h.b16 %v323
    %v435 = vunpack.c.l.b16 %v324
    %v436 = vunpack.c.h.b16 %v324
    %v437 = vunpack.c.l.b16 %v325
    %v438 = vunpack.c.h.b16 %v325
    %v439 = vunpack.c.l.b16 %v326
    %v440 = vunpack.c.h.b16 %v326
    %v441 = vunpack.c.l.b16 %v327
    %v442 = vunpack.c.h.b16 %v327
    %v443 = vunpack.c.l.b16 %v328
    %v444 = vunpack.c.h.b16 %v328
    %v445 = vunpack.c.l.b16 %v329
    %v446 = vunpack.c.h.b16 %v329
    %v447 = vunpack.c.l.b16 %v330
    %v448 = vunpack.c.h.b16 %v330
    %v449 = vunpack.c.l.b16 %v331
    %v450 = vunpack.c.h.b16 %v331
    %v451 = vunpack.c.l.b16 %v332
    %v452 = vunpack.c.h.b16 %v332
    %v453 = vunpack.c.l.b16 %v333
    %v454 = vunpack.c.h.b16 %v333
    %v455 = vunpack.c.l.b16 %v334
    %v456 = vunpack.c.h.b16 %v334
    %v457 = vunpack.c.l.b16 %v335
    %v458 = vunpack.c.h.b16 %v335
    %v459 = vunpack.c.l.b16 %v336
    %v460 = vunpack.c.h.b16 %v336
    %v461 = vunpack.c.l.b16 %v337
    %v462 = vunpack.c.h.b16 %v337
    %v463 = vunpack.c.l.b16 %v338
    %v464 = vunpack.c.h.b16 %v338
    %v465 = vunpack.c.l.b16 %v339
    %v466 = vunpack.c.h.b16 %v339
    %v467 = vunpack.c.l.b16 %v340
    %v468 = vunpack.c.h.b16 %v340
    %v469 = vunpack.c.l.b16 %v341
    %v470 = vunpack.c.h.b16 %v341
    %v471 = vunpack.c.l.b16 %v342
    %v472 = vunpack.c.h.b16 %v342
    %v473 = vunpack.c.l.b16 %v343
    %v474 = vunpack.c.h.b16 %v343
    %v475 = vunpack.c.l.b16 %v344
    %v476 = vunpack.c.h.b16 %v344
    %v477 = vunpack.c.l.b16 %v345
    %v478 = vunpack.c.h.b16 %v345
    %v479 = vunpack.c.l.b16 %v346
    %v480 = vunpack.c.h.b16 %v346
    %v481 = vunpack.c.l.b16 %v347
    %v482 = vunpack.c.h.b16 %v347
    %v483 = vunpack.c.l.b16 %v348
    %v484 = vunpack.c.h.b16 %v348
    %v485 = vunpack.c.l.b16 %v349
    %v486 = vunpack.c.h.b16 %v349
    %v487 = vunpack.c.l.b16 %v350
    %v488 = vunpack.c.h.b16 %v350
    %v489 = vunpack.c.l.b16 %v351
    %v490 = vunpack.c.h.b16 %v351
    %v491 = vunpack.c.l.b16 %v352
    %v492 = vunpack.c.h.b16 %v352
    %v493 = vunpack.c.l.b16 %v353
    %v494 = vunpack.c.h.b16 %v353
    %v495 = vunpack.c.l.b16 %v354
    %v496 = vunpack.c.h.b16 %v354
    %v497 = vunpack.c.l.b16 %v355
    %v498 = vunpack.c.h.b16 %v355
    %v499 = vunpack.c.l.b16 %v356
    %v500 = vunpack.c.h.b16 %v356
    %v501 = vpack.c.b16 %v411, %v405
    %v502 = vpack.c.b16 %v412, %v406
    %v503 = vpack.c.b16 %v413, %v407
    %v504 = vpack.c.b16 %v414, %v408
    %v505 = vpack.c.b16 %v415, %v409
    %v506 = vpack.c.b16 %v416, %v410
    %v507 = vpack.c.b16 %v423, %v417
    %v508 = vpack.c.b16 %v424, %v418
    %v509 = vpack.c.b16 %v425, %v419
    %v510 = vpack.c.b16 %v426, %v420
    %v511 = vpack.c.b16 %v427, %v421
    %v512 = vpack.c.b16 %v428, %v422
    %v513 = vpack.c.b16 %v435, %v429
    %v514 = vpack.c.b16 %v436, %v430
    %v515 = vpack.c.b16 %v437, %v431
    %v516 = vpack.c.b16 %v438, %v432
    %v517 = vpack.c.b16 %v439, %v433
    %v518 = vpack.c.b16 %v440, %v434
    %v519 = vpack.c.b16 %v447, %v441
    %v520 = vpack.c.b16 %v448, %v442
    %v521 = vpack.c.b16 %v449, %v443
    %v522 = vpack.c.b16 %v450, %v444
    %v523 = vpack.c.b16 %v451, %v445
    %v524 = vpack.c.b16 %v452, %v446
    %v525 = vpack.c.b16 %v459, %v453
    %v526 = vpack.c.b16 %v460, %v454
    %v527 = vpack.c.b16 %v461, %v455
    %v528 = vpack.c.b16 %v462, %v456
    %v529 = vpack.c.b16 %v463, %v457
    %v530 = vpack.c.b16 %v464, %v458
    %v531 = vpack.c.b16 %v471, %v465
    %v532 = vpack.c.b16 %v472, %v466
    %v533 = vpack.c.b16 %v473, %v467
    %v534 = vpack.c.b16 %v474, %v468
    %v535 = vpack.c.b16 %v475, %v469
    %v536 = vpack.c.b16 %v476, %v470
    %v537 = vpack.c.b16 %v483, %v477
    %v538 = vpack.c.b16 %v484, %v478
    %v539 = vpack.c.b16 %v485, %v479
    %v540 = vpack.c.b16 %v486, %v480
    %v541 = vpack.c.b16 %v487, %v481
    %v542 = vpack.c.b16 %v488, %v482
    %v543 = vpack.c.b16 %v495, %v489
    %v544 = vpack.c.b16 %v496, %v490
    %v545 = vpack.c.b16 %v497, %v491
    %v546 = vpack.c.b16 %v498, %v492
    %v547 = vpack.c.b16 %v499, %v493
    %v548 = vpack.c.b16 %v500, %v494
    %597 = vmatprep.subr.bf16.mxu0 %v502
    %598 = vmatpush1.bf16.msra.mxu0 %v501
    %599 = vmatprep.subr.bf16.mxu0 %v508
    %600 = vmatpush1.bf16.msra.mxu0 %v507
    %601 = vmatprep.subr.bf16.mxu0 %v514
    %602 = vmatpush1.bf16.msra.mxu0 %v513
    %603 = vmatprep.subr.bf16.mxu0 %v520
    %604 = vmatpush1.bf16.msra.mxu0 %v519
    %605 = vmatprep.subr.bf16.mxu0 %v526
    %606 = vmatpush1.bf16.msra.mxu0 %v525
    %607 = vmatprep.subr.bf16.mxu0 %v532
    %608 = vmatpush1.bf16.msra.mxu0 %v531
    %609 = vmatprep.subr.bf16.mxu0 %v538
    %610 = vmatpush1.bf16.msra.mxu0 %v537
    %611 = vmatprep.subr.bf16.mxu0 %v544
    %612 = vmatpush1.bf16.msra.mxu0 %v543
    %613 = vmatprep.subr.bf16.mxu0 0
    %614 = vmatpush1.bf16.msra.mxu0 0
    %615 = vmatprep.subr.bf16.mxu0 0
    %616 = vmatpush1.bf16.msra.mxu0 0
    %617 = vmatprep.subr.bf16.mxu0 0
    %618 = vmatpush1.bf16.msra.mxu0 0
    %619 = vmatprep.subr.bf16.mxu0 0
    %620 = vmatpush1.bf16.msra.mxu0 0
    %621 = vmatprep.subr.bf16.mxu0 0
    %622 = vmatpush1.bf16.msra.mxu0 0
    %623 = vmatprep.subr.bf16.mxu0 0
    %624 = vmatpush1.bf16.msra.mxu0 0
    %625 = vmatprep.subr.bf16.mxu0 0
    %626 = vmatpush1.bf16.msra.mxu0 0
    %627 = vmatprep.subr.bf16.mxu0 0
    %628 = vmatpush1.bf16.msra.mxu0 0
    %629 = vmatprep.mubr.bf16.mxu0 0
    %630 = vmatmul.mubr.bf16.gmra.mrb[0].mxu0 %v307
    %v631 = vpop.f32.mrb[0].mxu0
    %v632 = vadd.f32 0.0, %v631
    %v633 = vpop.f32.mrb[0].mxu0
    %v634 = vadd.f32 0.0, %v633
    %v635 = vpop.f32.mrb[0].mxu0
    %v636 = vadd.f32 0.0, %v635
    %v637 = vpop.f32.mrb[0].mxu0
    %v638 = vadd.f32 0.0, %v637
    %639 = vmatprep.mubr.bf16.mxu0 0
    %640 = vmatmul.mubr.bf16.gmra.mrb[0].mxu0 %v308
    %v641 = vpop.f32.mrb[0].mxu0
    %v642 = vadd.f32 0.0, %v641
    %v643 = vpop.f32.mrb[0].mxu0
    %v644 = vadd.f32 0.0, %v643
    %v645 = vpop.f32.mrb[0].mxu0
    %v646 = vadd.f32 0.0, %v645
    %v647 = vpop.f32.mrb[0].mxu0
    %v648 = vadd.f32 0.0, %v647
    %649 = vdwg.mxu0
    %650 = vmatprep.subr.bf16.mxu0 %v504
    %651 = vmatpush1.bf16.msra.mxu0 %v503
    %652 = vmatprep.subr.bf16.mxu0 %v510
    %653 = vmatpush1.bf16.msra.mxu0 %v509
    %654 = vmatprep.subr.bf16.mxu0 %v516
    %655 = vmatpush1.bf16.msra.mxu0 %v515
    %656 = vmatprep.subr.bf16.mxu0 %v522
    %657 = vmatpush1.bf16.msra.mxu0 %v521
    %658 = vmatprep.subr.bf16.mxu0 %v528
    %659 = vmatpush1.bf16.msra.mxu0 %v527
    %660 = vmatprep.subr.bf16.mxu0 %v534
    %661 = vmatpush1.bf16.msra.mxu0 %v533
    %662 = vmatprep.subr.bf16.mxu0 %v540
    %663 = vmatpush1.bf16.msra.mxu0 %v539
    %664 = vmatprep.subr.bf16.mxu0 %v546
    %665 = vmatpush1.bf16.msra.mxu0 %v545
    %666 = vmatprep.subr.bf16.mxu0 0
    %667 = vmatpush1.bf16.msra.mxu0 0
    %668 = vmatprep.subr.bf16.mxu0 0
    %669 = vmatpush1.bf16.msra.mxu0 0
    %670 = vmatprep.subr.bf16.mxu0 0
    %671 = vmatpush1.bf16.msra.mxu0 0
    %672 = vmatprep.subr.bf16.mxu0 0
    %673 = vmatpush1.bf16.msra.mxu0 0
    %674 = vmatprep.subr.bf16.mxu0 0
    %675 = vmatpush1.bf16.msra.mxu0 0
    %676 = vmatprep.subr.bf16.mxu0 0
    %677 = vmatpush1.bf16.msra.mxu0 0
    %678 = vmatprep.subr.bf16.mxu0 0
    %679 = vmatpush1.bf16.msra.mxu0 0
    %680 = vmatprep.subr.bf16.mxu0 0
    %681 = vmatpush1.bf16.msra.mxu0 0
    %682 = vmatprep.mubr.bf16.mxu0 0
    %683 = vmatmul.mubr.bf16.gmra.mrb[0].mxu0 %v307
    %v684 = vpop.f32.mrb[0].mxu0
    %v685 = vadd.f32 0.0, %v684
    %v686 = vpop.f32.mrb[0].mxu0
    %v687 = vadd.f32 0.0, %v686
    %v688 = vpop.f32.mrb[0].mxu0
    %v689 = vadd.f32 0.0, %v688
    %v690 = vpop.f32.mrb[0].mxu0
    %v691 = vadd.f32 0.0, %v690
    %692 = vmatprep.mubr.bf16.mxu0 0
    %693 = vmatmul.mubr.bf16.gmra.mrb[0].mxu0 %v308
    %v694 = vpop.f32.mrb[0].mxu0
    %v695 = vadd.f32 0.0, %v694
    %v696 = vpop.f32.mrb[0].mxu0
    %v697 = vadd.f32 0.0, %v696
    %v698 = vpop.f32.mrb[0].mxu0
    %v699 = vadd.f32 0.0, %v698
    %v700 = vpop.f32.mrb[0].mxu0
    %v701 = vadd.f32 0.0, %v700
    %702 = vdwg.mxu0
    %703 = vmatprep.subr.bf16.mxu0 %v506
    %704 = vmatpush1.bf16.msra.mxu0 %v505
    %705 = vmatprep.subr.bf16.mxu0 %v512
    %706 = vmatpush1.bf16.msra.mxu0 %v511
    %707 = vmatprep.subr.bf16.mxu0 %v518
    %708 = vmatpush1.bf16.msra.mxu0 %v517
    %709 = vmatprep.subr.bf16.mxu0 %v524
    %710 = vmatpush1.bf16.msra.mxu0 %v523
    %711 = vmatprep.subr.bf16.mxu0 %v530
    %712 = vmatpush1.bf16.msra.mxu0 %v529
    %713 = vmatprep.subr.bf16.mxu0 %v536
    %714 = vmatpush1.bf16.msra.mxu0 %v535
    %715 = vmatprep.subr.bf16.mxu0 %v542
    %716 = vmatpush1.bf16.msra.mxu0 %v541
    %717 = vmatprep.subr.bf16.mxu0 %v548
    %718 = vmatpush1.bf16.msra.mxu0 %v547
    %719 = vmatprep.subr.bf16.mxu0 0
    %720 = vmatpush1.bf16.msra.mxu0 0
    %721 = vmatprep.subr.bf16.mxu0 0
    %722 = vmatpush1.bf16.msra.mxu0 0
    %723 = vmatprep.subr.bf16.mxu0 0
    %724 = vmatpush1.bf16.msra.mxu0 0
    %725 = vmatprep.subr.bf16.mxu0 0
    %726 = vmatpush1.bf16.msra.mxu0 0
    %727 = vmatprep.subr.bf16.mxu0 0
    %728 = vmatpush1.bf16.msra.mxu0 0
    %729 = vmatprep.subr.bf16.mxu0 0
    %730 = vmatpush1.bf16.msra.mxu0 0
    %731 = vmatprep.subr.bf16.mxu0 0
    %732 = vmatpush1.bf16.msra.mxu0 0
    %733 = vmatprep.subr.bf16.mxu0 0
    %734 = vmatpush1.bf16.msra.mxu0 0
    %735 = vmatprep.mubr.bf16.mxu0 0
    %736 = vmatmul.mubr.bf16.gmra.mrb[0].mxu0 %v307
    %v737 = vpop.f32.mrb[0].mxu0
    %v738 = vadd.f32 0.0, %v737
    %v739 = vpop.f32.mrb[0].mxu0
    %v740 = vadd.f32 0.0, %v739
    %v741 = vpop.f32.mrb[0].mxu0
    %v742 = vadd.f32 0.0, %v741
    %v743 = vpop.f32.mrb[0].mxu0
    %v744 = vadd.f32 0.0, %v743
    %745 = vmatprep.mubr.bf16.mxu0 0
    %746 = vmatmul.mubr.bf16.gmra.mrb[0].mxu0 %v308
    %v747 = vpop.f32.mrb[0].mxu0
    %v748 = vadd.f32 0.0, %v747
    %v749 = vpop.f32.mrb[0].mxu0
    %v750 = vadd.f32 0.0, %v749
    %v751 = vpop.f32.mrb[0].mxu0
    %v752 = vadd.f32 0.0, %v751
    %v753 = vpop.f32.mrb[0].mxu0
    %v754 = vadd.f32 0.0, %v753
    %755 = vdwg.mxu0
    %v756 = vpack.c.bf16 %v636, %v632
    %v757 = vpack.c.bf16 %v638, %v634
    %v758 = vpack.c.bf16 %v689, %v685
    %v759 = vpack.c.bf16 %v691, %v687
    %v760 = vpack.c.bf16 %v742, %v738
    %v761 = vpack.c.bf16 %v744, %v740
    %v762 = vpack.c.bf16 %v646, %v642
    %v763 = vpack.c.bf16 %v648, %v644
    %v764 = vpack.c.bf16 %v699, %v695
    %v765 = vpack.c.bf16 %v701, %v697
    %v766 = vpack.c.bf16 %v752, %v748
    %v767 = vpack.c.bf16 %v754, %v750
    %v780 = vunpack.c.l.b16 %v756
    %v781 = vunpack.c.l.b16 %v757
    %v782 = vunpack.c.l.b16 %v758
    %v783 = vunpack.c.l.b16 %v759
    %v784 = vunpack.c.l.b16 %v760
    %v785 = vunpack.c.l.b16 %v761
    %v786 = vunpack.c.h.b16 %v756
    %v787 = vunpack.c.h.b16 %v757
    %v788 = vunpack.c.h.b16 %v758
    %v789 = vunpack.c.h.b16 %v759
    %v790 = vunpack.c.h.b16 %v760
    %v791 = vunpack.c.h.b16 %v761
    %v792 = vunpack.c.l.b16 %v762
    %v793 = vunpack.c.l.b16 %v763
    %v794 = vunpack.c.l.b16 %v764
    %v795 = vunpack.c.l.b16 %v765
    %v796 = vunpack.c.l.b16 %v766
    %v797 = vunpack.c.l.b16 %v767
    %v798 = vunpack.c.h.b16 %v762
    %v799 = vunpack.c.h.b16 %v763
    %v800 = vunpack.c.h.b16 %v764
    %v801 = vunpack.c.h.b16 %v765
    %v802 = vunpack.c.h.b16 %v766
    %v803 = vunpack.c.h.b16 %v767
    %v804 = vpack.c.b16 %v781, %v780
    %v805 = vpack.c.b16 %v783, %v782
    %v806 = vpack.c.b16 %v785, %v784
    %v807 = vpack.c.b16 %v787, %v786
    %v808 = vpack.c.b16 %v789, %v788
    %v809 = vpack.c.b16 %v791, %v790
    %v810 = vpack.c.b16 %v793, %v792
    %v811 = vpack.c.b16 %v795, %v794
    %v812 = vpack.c.b16 %v797, %v796
    %v813 = vpack.c.b16 %v799, %v798
    %v814 = vpack.c.b16 %v801, %v800
    %v815 = vpack.c.b16 %v803, %v802
    %828 = vst [vmem:[#allocation7] sm:$0xff] %v804
    %829 = vst [vmem:[#allocation7 + $0x8] sm:$0xff] %v805
    %830 = vst [vmem:[#allocation7 + $0x10] sm:$0xff] %v806
    %831 = vst [vmem:[#allocation7 + $0x18] sm:$0xff] %v807
    %832 = vst [vmem:[#allocation7 + $0x20] sm:$0xff] %v808
    %833 = vst [vmem:[#allocation7 + $0x28] sm:$0xff] %v809
    %834 = vst [vmem:[#allocation7 + $0x30] sm:$0xff] %v810
    %835 = vst [vmem:[#allocation7 + $0x38] sm:$0xff] %v811
    %836 = vst [vmem:[#allocation7 + $0x40] sm:$0xff] %v812
    %837 = vst [vmem:[#allocation7 + $0x48] sm:$0xff] %v813
    %838 = vst [vmem:[#allocation7 + $0x50] sm:$0xff] %v814
    %839 = vst [vmem:[#allocation7 + $0x58] sm:$0xff] %v815
    // Predicated region
    $region34: #{tpu_custom_call.1} parent=1 // pred_check
      _
    $region35: #{tpu_custom_call.1} parent=1 // pred_check_branch
      %841 = sbr.rel (0) target = $region37
    $region36: #{tpu_custom_call.1} parent=1 // pred_region
      %s843 = ssub.s32 1536, 1536
      %844 = vsyncadd [#allocation4], %s843
      %s845 = sshll.u32 [#allocation7], 4
      %s846 = int_to_ptr.vmem [resolvable:$true] %s845
      %851 = dma.vmem_to_hbm [thread:$0]  %s846, 1536, %s6, [#allocation4], 384, 384, 24
    $region37: #{tpu_custom_call.1} parent=1 // pred_fallthru
      _
    // Predicated region
    $region38: #{tpu_custom_call.1} parent=1 // pred_check
      _
    $region39: #{tpu_custom_call.1} parent=1 // pred_check_branch
      %853 = sbr.rel (0) target = $region41
    $region40: #{tpu_custom_call.1} parent=1 // pred_region
      %854 = dma.done [#allocation4], 1536
    $region41: #{tpu_custom_call.1} parent=1 // pred_fallthru
      _
    %855 = vsyncpa [#allocation3], 1
    %856 = vsyncpa [#allocation6], 1
    %857 = vsyncpa [#allocation4], 1

</llo_original>
